<compile_context>
chip_gen: v5e
topology: v5e:2x2
jax: 0.10.0
libtpu: 0.0.40
codegen_flags: <defaults>
</compile_context>

<pallas_src>
import functools
import math

import jax
import jax.numpy as jnp
from jax.experimental import pallas as pl
from jax.experimental.pallas import tpu as pltpu

_MIB = 1024 * 1024


def _budgets():
    """Generation-aware (block_bytes_budget, vmem_limit_bytes)."""
    try:
        cap = int(pltpu.get_tpu_info().vmem_capacity_bytes)
    except Exception:
        cap = 0
    if cap >= 100 * _MIB:          # v5e / v6e: 128 MiB physical VMEM
        return 12 * _MIB, 80 * _MIB
    if cap > 0:                    # v7x: 64 MiB per TensorCore
        return 10 * _MIB, 56 * _MIB
    return 6 * _MIB, 48 * _MIB     # unknown: conservative, fits every generation


def _sublane_pack(dtype):
    # 8 for f32, 16 for bf16, 32 for int8/fp8.
    return max(8, 32 // jnp.dtype(dtype).itemsize)


def _pick_block_rows(rows, row_bytes, budget, sub):
    """Largest lane-dense row tile: multiple of the sublane pack, <= byte budget."""
    if rows <= sub:
        return rows                               # full extent is always legal
    max_rows = max(sub, budget // max(row_bytes, 1))
    tm = max(sub, (max_rows // sub) * sub)
    tm = min(tm, 32768)                           # sanity cap; bytes are the real limit
    tm = min(tm, ((rows + sub - 1) // sub) * sub)
    return tm


def _lane_fold(rows, H, max_fused=2048):
    """Fold k rows into lanes so the fused last dim is a multiple of 128.

    Requires rows % k == 0; returns 1 (no fold) if H is already lane-dense or
    no legal k exists.
    """
    if H % 128 == 0:
        return 1
    k = 128 // math.gcd(H, 128)
    if k > rows or rows % k != 0:
        return 1
    while k * 2 * H <= max_fused and rows % (k * 2) == 0:
        k *= 2
    return k


def _gate2d_kernel(x_ref, m_ref, o_ref):
    # x_ref: (tm, Hf); m_ref: (1, Hf), VMEM-resident (constant index_map).
    o_ref[...] = x_ref[...] * m_ref[...]


def _gate3d_kernel(x_ref, m_ref, o_ref, *, tb, whole_mask):
    # x_ref: (tb, ts, Hf); m_ref: full (B, Hf), VMEM-resident (constant index_map).
    if whole_mask:
        m = m_ref[...]                                    # (tb == B, Hf)
    else:
        b0 = pl.multiple_of(pl.program_id(0) * tb, tb)
        m = m_ref[pl.ds(b0, tb), :]                       # (tb, Hf)
    o_ref[...] = x_ref[...] * m[:, None, :]


def linear_width_gate(x, gate_f, width):
    """Apply LinearWidthGate to x.

    Args:
      x:      jnp.ndarray of shape (B, S, H).
      gate_f: jnp.ndarray of shape (bs, width) with B % bs == 0.
      width:  int, number of gate groups; H must be divisible by width.

    Returns:
      jnp.ndarray of shape (B, S, H), x gated per hidden-channel group.
    """
    B, S, H = x.shape
    assert H % width == 0, "hidden dim must be divisible by gate width"
    bs = gate_f.shape[0]
    assert B % bs == 0, "x batch must be a multiple of the gate batch"

    dtype = x.dtype
    itemsize = jnp.dtype(dtype).itemsize
    sub = _sublane_pack(dtype)
    budget, vmem_limit = _budgets()

    # repeat_interleave(gate_f, H // width, dim=1) -> (bs, H). Tiny; plain JAX.
    mask = jnp.repeat(gate_f.astype(dtype), H // width, axis=1)

    if bs == 1:
        # Fast path: batch-invariant mask.  Flatten to (B*S, H), optionally fold
        # rows into lanes, and stream big lane-dense 2D blocks; the (1, Hf) mask
        # block has constant index so it stays VMEM-resident for the whole grid.
        R = B * S
        k = _lane_fold(R, H)
        Hf = k * H
        rows = R // k
        x2 = x.reshape(rows, Hf)
        m2 = jnp.tile(mask, (1, k)) if k > 1 else mask          # (1, Hf)

        tm = _pick_block_rows(rows, Hf * itemsize, budget, sub)
        grid = (pl.cdiv(rows, tm),)
        out = pl.pallas_call(
            _gate2d_kernel,
            out_shape=jax.ShapeDtypeStruct((rows, Hf), dtype),
            grid_spec=pltpu.PrefetchScalarGridSpec(
                num_scalar_prefetch=0,
                grid=grid,
                in_specs=[
                    pl.BlockSpec((tm, Hf), lambda i: (i, 0)),
                    pl.BlockSpec((1, Hf), lambda i: (0, 0)),    # resident mask
                ],
                out_specs=pl.BlockSpec((tm, Hf), lambda i: (i, 0)),
            ),
            compiler_params=pltpu.CompilerParams(
                # "parallel" lets megacore / 2-TC (v7x) shard the 1-D stream.
                dimension_semantics=("parallel",),
                vmem_limit_bytes=vmem_limit,
            ),
        )(x2, m2)
        return out.reshape(B, S, H)

    # General path (bs > 1): per-batch gate row.  Expand the mask to (B, H) in
    # JAX (tiny) and keep it fully resident in VMEM as ONE legal full-extent
    # block; select the per-block rows in-kernel.  Fold the sequence axis into
    # lanes when H is narrow, and tile the batch axis when S is small so that
    # blocks stay multi-MiB.
    mask_b = jnp.tile(mask, (B // bs, 1))                       # mask_b[b] = mask[b % bs]
    k = _lane_fold(S, H)
    Hf = k * H
    Sf = S // k
    x3 = x.reshape(B, Sf, Hf)
    m3 = jnp.tile(mask_b, (1, k)) if k > 1 else mask_b          # (B, Hf)

    row_bytes = Hf * itemsize
    ts = _pick_block_rows(Sf, row_bytes, budget, sub)
    if ts >= Sf:
        ts = Sf
        per_batch = Sf * row_bytes
        tb = max(1, min(B, budget // max(per_batch, 1)))
        while B % tb != 0:                                      # keep batch blocks exact
            tb -= 1
    else:
        tb = 1

    grid = (B // tb, pl.cdiv(Sf, ts))
    kernel = functools.partial(_gate3d_kernel, tb=tb, whole_mask=(tb == B))
    out = pl.pallas_call(
        kernel,
        out_shape=jax.ShapeDtypeStruct((B, Sf, Hf), dtype),
        grid_spec=pltpu.PrefetchScalarGridSpec(
            num_scalar_prefetch=0,
            grid=grid,
            in_specs=[
                pl.BlockSpec((tb, ts, Hf), lambda b, s: (b, s, 0)),
                pl.BlockSpec((B, Hf), lambda b, s: (0, 0)),     # full mask, resident
            ],
            out_specs=pl.BlockSpec((tb, ts, Hf), lambda b, s: (b, s, 0)),
        ),
        compiler_params=pltpu.CompilerParams(
            dimension_semantics=("parallel", "parallel"),
            vmem_limit_bytes=vmem_limit,
        ),
    )(x3, m3)
    return out.reshape(B, S, H)


if __name__ == "__main__":
    # Small shapes consistent with the module: batch=2, seq=8, hidden=32, width=4.
    B, S, H, WIDTH = 2, 8, 32, 4

    key = jax.random.PRNGKey(0)
    kx, kg = jax.random.split(key)
    x = jax.random.normal(kx, (B, S, H), dtype=jnp.float32)

    def ref_gate(xv, gv):
        return xv * jnp.repeat(gv, xv.shape[-1] // gv.shape[-1], axis=1)[
            jnp.arange(xv.shape[0]) % gv.shape[0]][:, None, :]

    # 1) bs == 1 (fast path), as in the module default.
    gate1 = jax.random.uniform(kg, (1, WIDTH), dtype=jnp.float32)
    out1 = jax.block_until_ready(linear_width_gate(x, gate1, WIDTH))
    assert jnp.allclose(out1, ref_gate(x, gate1), atol=1e-6, rtol=1e-6), "bs=1 mismatch"

    # 2) bs == B (per-batch gate path).
    gate_b = jax.random.uniform(jax.random.PRNGKey(1), (B, WIDTH), dtype=jnp.float32)
    out2 = jax.block_until_ready(linear_width_gate(x, gate_b, WIDTH))
    assert jnp.allclose(out2, ref_gate(x, gate_b), atol=1e-6, rtol=1e-6), "bs=B mismatch"

    # 3) 1 < bs < B (gate repeated over the batch), previously untested.
    B2 = 4
    x2 = jax.random.normal(jax.random.PRNGKey(2), (B2, S, H), dtype=jnp.float32)
    gate2 = jax.random.uniform(jax.random.PRNGKey(3), (2, WIDTH), dtype=jnp.float32)
    out3 = jax.block_until_ready(linear_width_gate(x2, gate2, WIDTH))
    assert jnp.allclose(out3, ref_gate(x2, gate2), atol=1e-6, rtol=1e-6), "1<bs<B mismatch"

    print("KERNEL_OK")
</pallas_src>

<mosaic_0001>
module attributes {stable_mosaic.version = 11 : i64} {
  func.func @_gate2d_kernel(%arg0: i32, %arg1: memref<1x512xf32, #tpu.memory_space<vmem>>, %arg2: memref<1x512xf32, #tpu.memory_space<vmem>>, %arg3: memref<1x512xf32, #tpu.memory_space<vmem>>) attributes {dimension_semantics = [#tpu.dimension_semantics<parallel>], iteration_bounds = array<i64: 1>, scalar_prefetch = 0 : i64, scratch_operands = 0 : i64, tpu.core_type = #tpu.core_type<tc>, window_params = [{transform_indices = @transform_0, window_bounds = array<i64: 1, 512>}, {pipeline_mode = #tpu.pipeline_mode<synchronous>, transform_indices = @transform_1, window_bounds = array<i64: 1, 512>}, {transform_indices = @transform_2, window_bounds = array<i64: 1, 512>}]} {
    %c0 = arith.constant 0 : index
    %c0_0 = arith.constant 0 : index
    %0 = vector.load %arg1[%c0, %c0_0] : memref<1x512xf32, #tpu.memory_space<vmem>>, vector<1x512xf32>
    %c0_1 = arith.constant 0 : index
    %c0_2 = arith.constant 0 : index
    %1 = vector.load %arg2[%c0_1, %c0_2] : memref<1x512xf32, #tpu.memory_space<vmem>>, vector<1x512xf32>
    %2 = arith.mulf %0, %1 : vector<1x512xf32>
    %c0_3 = arith.constant 0 : index
    %c0_4 = arith.constant 0 : index
    %3 = vector.load %arg3[%c0_3, %c0_4] : memref<1x512xf32, #tpu.memory_space<vmem>>, vector<1x512xf32>
    tpu.vector_store %arg3[%c0_3, %c0_4], %2 {strides = array<i32>} : memref<1x512xf32, #tpu.memory_space<vmem>>, vector<1x512xf32>,
    return
  }
  func.func @transform_0(%arg0: i32) -> (i32, i32) {
    %c0_i32 = arith.constant 0 : i32
    %c0_i32_0 = arith.constant 0 : i32
    return %arg0, %c0_i32 : i32, i32
  }
  func.func @transform_1(%arg0: i32) -> (i32, i32) {
    %c0_i32 = arith.constant 0 : i32
    %c0_i32_0 = arith.constant 0 : i32
    %c0_i32_1 = arith.constant 0 : i32
    return %c0_i32, %c0_i32_0 : i32, i32
  }
  func.func @transform_2(%arg0: i32) -> (i32, i32) {
    %c0_i32 = arith.constant 0 : i32
    %c0_i32_0 = arith.constant 0 : i32
    return %arg0, %c0_i32 : i32, i32
  }
}

</mosaic_0001>

<llo_original>
// kernel: tpu_custom_call.1
$region0: #{tpu_custom_call.1}
  #allocation0 [shape = 'u32[]', space=smem, size = 0x4, offset = 0x4, fixed_abs, tag = 'smem constant byte address 0x4 - core index']
  #allocation1 [shape = 'u32[72,128]{1,0:T(1,128)}', space=vmem, size = 0x9000, scoped, tag = 'internal scratch']
  %s0 = inlined_call_operand.hbm [shape: f32[1,512], index: 0, kind: input, shape index: {}]
  %s1 = inlined_call_operand.hbm [shape: f32[1,512], index: 1, kind: input, shape index: {}]
  %s2 = inlined_call_operand.hbm [shape: f32[1,512], index: 2, kind: output, shape index: {}]
  %s3 = sld [smem:[#allocation0]]
  $region26: #{tpu_custom_call.1} parent=0
    _
  %s5 = ssub.s32 1, %s3
  %s6 = scalar_select 0, %s5, %s3
  $region1: #{tpu_custom_call.1} parent=0
    #allocation2 [shape = 'u8[2048]{0}', space=vmem, size = 0x800, scoped, tag = 'input window, operand 0, single buffered']
    #allocation3 [shape = 's32[1]{0}', space=sflag, size = 0x4, scoped, tag = 'scoped memory for tpu_custom_call.1']
    #allocation4 [shape = 's32[1]{0}', space=sflag, size = 0x4, scoped, tag = 'scoped memory for tpu_custom_call.1']
    #allocation5 [shape = 'u8[2048]{0}', space=vmem, size = 0x800, scoped, tag = 'input window, operand 1, single buffered']
    #allocation6 [shape = 's32[1]{0}', space=sflag, size = 0x4, scoped, tag = 'scoped memory for tpu_custom_call.1']
    #allocation7 [shape = 'u8[2048]{0}', space=vmem, size = 0x800, scoped, tag = 'output window, operand 0, single buffered']
    %7 = vsyncpa [#allocation3], 0
    %8 = vsyncpa [#allocation6], 0
    %9 = vsyncpa [#allocation4], 0
    // Predicated region
    $region2: #{tpu_custom_call.1} parent=1 // pred_check
      _
    $region3: #{tpu_custom_call.1} parent=1 // pred_check_branch
      %11 = sbr.rel (0) target = $region5
    $region4: #{tpu_custom_call.1} parent=1 // pred_region
      %13 = vsyncadd [#allocation3], 0
      %s15 = sshll.u32 %s0, 4
      %s16 = int_to_ptr.hbm [resolvable:$true] %s15
      %s17 = sshll.u32 [#allocation2], 4
      %s18 = int_to_ptr.vmem [resolvable:$true] %s17
      %20 = dma.hbm_to_vmem [thread:$0]  %s16, 64, %s18, [#allocation3]
    $region5: #{tpu_custom_call.1} parent=1 // pred_fallthru
      _
    // Predicated region
    $region6: #{tpu_custom_call.1} parent=1 // pred_check
      _
    $region7: #{tpu_custom_call.1} parent=1 // pred_check_branch
      %22 = sbr.rel (0) target = $region9
    $region8: #{tpu_custom_call.1} parent=1 // pred_region
      %24 = vsyncadd [#allocation6], 0
      %s26 = sshll.u32 %s1, 4
      %s27 = int_to_ptr.hbm [resolvable:$true] %s26
      %s28 = sshll.u32 [#allocation5], 4
      %s29 = int_to_ptr.vmem [resolvable:$true] %s28
      %31 = dma.hbm_to_vmem [thread:$0]  %s27, 64, %s29, [#allocation6]
    $region9: #{tpu_custom_call.1} parent=1 // pred_fallthru
      _
    // Predicated region
    $region10: #{tpu_custom_call.1} parent=1 // pred_check
      _
    $region11: #{tpu_custom_call.1} parent=1 // pred_check_branch
      %33 = sbr.rel (0) target = $region13
    $region12: #{tpu_custom_call.1} parent=1 // pred_region
      %35 = dma.done [#allocation3], 64
    $region13: #{tpu_custom_call.1} parent=1 // pred_fallthru
      _
    // Predicated region
    $region14: #{tpu_custom_call.1} parent=1 // pred_check
      _
    $region15: #{tpu_custom_call.1} parent=1 // pred_check_branch
      %37 = sbr.rel (0) target = $region17
    $region16: #{tpu_custom_call.1} parent=1 // pred_region
      %39 = dma.done [#allocation6], 64
    $region17: #{tpu_custom_call.1} parent=1 // pred_fallthru
      _
    %v40 = vld [vmem:[#allocation2] sm:$0xf]
    %v41 = vld [vmem:[#allocation5] sm:$0xf]
    %v42 = vmul.f32 %v40, %v41
    %v43 = vlaneseq
    %vm44 = vcmp.ge.s32.totalorder %v43, 0
    %vm45 = vcmp.lt.s32.totalorder %v43, 512
    %vm46 = vmand %vm44, %vm45
    %47 = vst.msk [vmem:[#allocation7] sm:$0xf] %vm46, %v42
    // Predicated region
    $region18: #{tpu_custom_call.1} parent=1 // pred_check
      _
    $region19: #{tpu_custom_call.1} parent=1 // pred_check_branch
      %49 = sbr.rel (0) target = $region21
    $region20: #{tpu_custom_call.1} parent=1 // pred_region
      %51 = vsyncadd [#allocation4], 0
      %s53 = sshll.u32 [#allocation7], 4
      %s54 = int_to_ptr.vmem [resolvable:$true] %s53
      %s55 = sshll.u32 %s2, 4
      %s56 = int_to_ptr.hbm [resolvable:$true] %s55
      %58 = dma.vmem_to_hbm [thread:$0]  %s54, 64, %s56, [#allocation4]
    $region21: #{tpu_custom_call.1} parent=1 // pred_fallthru
      _
    // Predicated region
    $region22: #{tpu_custom_call.1} parent=1 // pred_check
      _
    $region23: #{tpu_custom_call.1} parent=1 // pred_check_branch
      %60 = sbr.rel (0) target = $region25
    $region24: #{tpu_custom_call.1} parent=1 // pred_region
      %62 = dma.done [#allocation4], 64
    $region25: #{tpu_custom_call.1} parent=1 // pred_fallthru
      _
    %63 = vsyncpa [#allocation3], 1
    %64 = vsyncpa [#allocation6], 1
    %65 = vsyncpa [#allocation4], 1

</llo_original>
